<compile_context>
chip_gen: v6e
topology: v6e:2x2x1
jax: 0.10.0
libtpu: 0.0.40
codegen_flags: <defaults>
</compile_context>

<pallas_src>
import functools

import jax
import jax.numpy as jnp
from jax import lax
from jax.experimental import pallas as pl
from jax.experimental.pallas import tpu as pltpu


def _lane_select(sub, per_chunk):
    """Splat per-sub-chunk (rows, G, 1) stats onto their lanes via selects."""
    out = per_chunk[0]
    for k in range(1, len(per_chunk)):
        out = jnp.where(sub == k, per_chunk[k], out)
    return out


def _soft_soft_mul_kernel(x_ref, o_ref, *, lst):
    # x_ref / o_ref block: (row_tile, T), time flat on the lane axis.
    n_rows, t = x_ref.shape
    n_full = t // lst                       # complete lst-chunks of real data
    rem = t - n_full * lst                  # real samples in the padded last chunk
    len_pad = (lst - rem) % lst             # zero-pad samples (> 0 iff rem > 0)
    head_len = n_full * lst
    f32 = jnp.float32

    # Lane-dense head path is valid when each 128-lane group holds whole
    # lst-chunks and the head spans whole 128-lane groups.
    lane_dense = n_full > 0 and (128 % lst == 0) and (head_len % 128 == 0)

    # ---- head: per-lst-chunk max + exp + per-chunk sum (bulk of the work) ----
    if n_full > 0:
        x_head = x_ref[:, :head_len].astype(f32)            # cast at consumer
        if lane_dense:
            g = head_len // 128
            p = 128 // lst                                   # lst-chunks per 128-lane group
            hv = x_head.reshape(n_rows, g, 128)              # lane-aligned view (~free)
            sub = lax.broadcasted_iota(jnp.int32, (n_rows, g, 128), 2) // lst
            m_list = [
                jnp.max(jnp.where(sub == k, hv, -jnp.inf), axis=-1, keepdims=True)
                for k in range(p)
            ]                                                # each (rows, g, 1)
            m_lane = _lane_select(sub, m_list)               # per-lane chunk max
            e_head = jnp.exp(hv - m_lane)                    # lane-dense, 1 exp / element
            s_list = [
                jnp.sum(jnp.where(sub == k, e_head, 0.0), axis=-1, keepdims=True)
                for k in range(p)
            ]                                                # chunk softmax denominators
            m_head = functools.reduce(
                jnp.maximum, [jnp.max(mk, axis=1) for mk in m_list])   # (rows, 1)
        else:
            hv = x_head.reshape(n_rows, n_full, lst)         # exact fallback view
            m_c = jnp.max(hv, axis=-1, keepdims=True)        # (rows, n_full, 1)
            e_head = jnp.exp(hv - m_c)
            s_c = jnp.sum(e_head, axis=-1, keepdims=True)
            m_head = jnp.max(m_c, axis=1)                    # (rows, 1)

    # ---- tail: the padded last chunk (rem real samples + len_pad zeros) ----
    if rem > 0:
        x_tail = x_ref[:, head_len:].astype(f32)             # (rows, rem)
        m_t = jnp.max(x_tail, axis=-1, keepdims=True)
        if len_pad > 0:
            m_t = jnp.maximum(m_t, 0.0)                       # pad zeros join the chunk max

    # ---- global (full padded time) max, from the per-chunk maxes only ----
    if n_full > 0 and rem > 0:
        m_g = jnp.maximum(m_head, m_t)
    elif n_full > 0:
        m_g = m_head                                          # rem==0 => no pad either
    else:
        m_g = m_t

    # ---- global softmax denominator ----
    s_g = jnp.zeros((n_rows, 1), f32)
    if n_full > 0:
        if lane_dense:
            corr_list = [jnp.exp(mk - m_g[:, None, :]) for mk in m_list]
            for k in range(p):
                s_g = s_g + jnp.sum(s_list[k] * corr_list[k], axis=1)
        else:
            corr_c = jnp.exp(m_c - m_g[:, None, :])
            s_g = s_g + jnp.sum(s_c * corr_c, axis=1)
    if rem > 0:
        e_t = jnp.exp(x_tail - m_t)
        s_t = jnp.sum(e_t, axis=-1, keepdims=True)
        if len_pad > 0:
            s_t = s_t + len_pad * jnp.exp(-m_t)               # pad zeros' contribution
        corr_t = jnp.exp(m_t - m_g)
        s_g = s_g + s_t * corr_t                              # carries pad terms into s_g

    # ---- out = softmax_global * softmax_chunk = e * e * corr / (s_c * s_g) ----
    # Direct slice stores (no concatenate / extra full-block copy).
    if n_full > 0:
        if lane_dense:
            scale_list = [corr_list[k] / (s_list[k] * s_g[:, None, :])
                          for k in range(p)]                  # tiny exact divides
            scale_lane = _lane_select(sub, scale_list)
            out_head = (e_head * e_head) * scale_lane
        else:
            scale_c = corr_c / (s_c * s_g[:, None, :])
            out_head = (e_head * e_head) * scale_c
        o_ref[:, :head_len] = out_head.reshape(n_rows, head_len).astype(o_ref.dtype)
    if rem > 0:
        scale_t = corr_t / (s_t * s_g)                        # (rows, 1)
        o_ref[:, head_len:] = ((e_t * e_t) * scale_t).astype(o_ref.dtype)


def soft_soft_mul(midis_ou, lst=64):
    """midis_ou: (batch, n_insts, time) float array. Returns same shape/dtype."""
    batch, n_insts, time = midis_ou.shape
    rows = batch * n_insts
    x2 = midis_ou.reshape(rows, time)       # merging leading dims: free, contiguous

    # Row tile: multiple of 8 (Mosaic tiling rule), f32 block <= ~2 MiB
    # (safe on v7x's 64 MiB VMEM, ~85%+ of HBM roofline on v5e/v6e), capped by
    # the row count.  cdiv grid accepts a partial last block; rows are fully
    # independent so OOB rows never cross rows and their stores are masked.
    if rows <= 8:
        row_tile = rows                      # full-dim block (any row count allowed)
    else:
        budget_rows = (2 << 20) // (4 * max(time, 1))
        row_tile = max(8, (budget_rows // 8) * 8)
        row_tile = min(row_tile, (rows // 8) * 8)
    grid = (pl.cdiv(rows, row_tile),)

    # NOTE: for extremely long rows (row_tile*time*4 bytes >> a few MiB) a
    # time-tiled two-pass variant would be needed to bound VMEM independent of
    # time; not required for drummernet-scale inputs.

    kernel = functools.partial(_soft_soft_mul_kernel, lst=lst)
    out2 = pl.pallas_call(
        kernel,
        out_shape=jax.ShapeDtypeStruct((rows, time), midis_ou.dtype),
        grid=grid,
        in_specs=[pl.BlockSpec((row_tile, time), lambda r: (r, 0))],
        out_specs=pl.BlockSpec((row_tile, time), lambda r: (r, 0)),
        compiler_params=pltpu.CompilerParams(
            dimension_semantics=("parallel",),
            vmem_limit_bytes=48 << 20,       # headroom for 2x(in)+2x(out) + f32 temps
        ),
    )(x2)
    return out2.reshape(batch, n_insts, time)


def _reference(midis_ou, lst=64):
    """Pure-JAX reference mirroring the PyTorch code line by line."""
    batch, n_insts, time = midis_ou.shape
    len_pad = (lst - time % lst) % lst
    x = jnp.pad(midis_ou, ((0, 0), (0, 0), (0, len_pad)))
    t_pad = time + len_pad
    # transpose(1,2) + Softmax(dim=1) + transpose back == softmax over padded time
    mi = jax.nn.softmax(x, axis=-1)
    mt = jax.nn.softmax(x.reshape(batch, n_insts, t_pad // lst, lst), axis=-1)
    mt = mt.reshape(batch, n_insts, t_pad)
    return (mi * mt)[:, :, :time]


if __name__ == "__main__":
    key = jax.random.PRNGKey(0)
    # Cover every static path:
    #   (2,4,100): chunked-fallback head (64 lanes) + padded tail
    #   (2,4,128): lane-dense head, no tail
    #   (2,4, 40): tail-only (time < lst)
    #   (2,4,192): chunked-fallback head, no tail
    #   (3,5,300): lane-dense head + padded tail, rows=15 -> partial edge block
    cases = [(2, 4, 100, 64), (2, 4, 128, 64), (2, 4, 40, 64),
             (2, 4, 192, 64), (3, 5, 300, 64)]
    for (batch, n_insts, time, lst) in cases:
        key, subkey = jax.random.split(key)
        midis_ou = jax.random.normal(subkey, (batch, n_insts, time), dtype=jnp.float32)

        out = jax.block_until_ready(soft_soft_mul(midis_ou, lst=lst))
        ref = jax.block_until_ready(_reference(midis_ou, lst=lst))

        assert out.shape == (batch, n_insts, time)
        assert jnp.allclose(out, ref, rtol=1e-5, atol=1e-6), (
            f"mismatch vs reference (shape={(batch, n_insts, time)})")

    print("KERNEL_OK")
</pallas_src>

<mosaic_0001>
module attributes {stable_mosaic.version = 11 : i64} {
  func.func @_soft_soft_mul_kernel(%arg0: i32, %arg1: memref<8x100xf32, #tpu.memory_space<vmem>>, %arg2: memref<8x100xf32, #tpu.memory_space<vmem>>) attributes {dimension_semantics = [#tpu.dimension_semantics<parallel>], iteration_bounds = array<i64: 1>, scalar_prefetch = 0 : i64, scratch_operands = 0 : i64, tpu.core_type = #tpu.core_type<tc>, window_params = [{transform_indices = @transform_0, window_bounds = array<i64: 8, 100>}, {transform_indices = @transform_1, window_bounds = array<i64: 8, 100>}]} {
    %c0 = arith.constant 0 : index
    %c0_0 = arith.constant 0 : index
    %0 = vector.load %arg1[%c0, %c0_0] : memref<8x100xf32, #tpu.memory_space<vmem>>, vector<8x64xf32>
    %1 = vector.shape_cast %0 : vector<8x64xf32> to vector<8x1x64xf32>
    %cst = arith.constant dense<0xFF800000> : vector<8x1xf32>
    %2 = vector.multi_reduction <maximumf>, %1, %cst [2] : vector<8x1x64xf32> to vector<8x1xf32>
    %3 = vector.shape_cast %2 : vector<8x1xf32> to vector<8x1x1xf32>
    %4 = vector.broadcast %3 : vector<8x1x1xf32> to vector<8x1x64xf32>
    %5 = arith.subf %1, %4 : vector<8x1x64xf32>
    %6 = math.exp %5 : vector<8x1x64xf32>
    %cst_1 = arith.constant dense<0.000000e+00> : vector<8x1xf32>
    %7 = vector.multi_reduction <add>, %6, %cst_1 [2] : vector<8x1x64xf32> to vector<8x1xf32>
    %8 = vector.shape_cast %7 : vector<8x1xf32> to vector<8x1x1xf32>
    %cst_2 = arith.constant dense<0xFF800000> : vector<8x1xf32>
    %9 = vector.multi_reduction <maximumf>, %3, %cst_2 [1] : vector<8x1x1xf32> to vector<8x1xf32>
    %c0_3 = arith.constant 0 : index
    %c64 = arith.constant 64 : index
    %10 = vector.load %arg1[%c0_3, %c64] : memref<8x100xf32, #tpu.memory_space<vmem>>, vector<8x36xf32>
    %cst_4 = arith.constant dense<0xFF800000> : vector<8xf32>
    %11 = vector.multi_reduction <maximumf>, %10, %cst_4 [1] : vector<8x36xf32> to vector<8xf32>
    %12 = vector.shape_cast %11 : vector<8xf32> to vector<8x1xf32>
    %cst_5 = arith.constant 0.000000e+00 : f32
    %13 = vector.broadcast %cst_5 : f32 to vector<8x1xf32>
    %14 = arith.maximumf %12, %13 : vector<8x1xf32>
    %15 = arith.maximumf %9, %14 : vector<8x1xf32>
    %cst_6 = arith.constant 0.000000e+00 : f32
    %16 = vector.broadcast %cst_6 : f32 to vector<8x1xf32>
    %17 = vector.shape_cast %15 : vector<8x1xf32> to vector<8x1x1xf32>
    %18 = arith.subf %3, %17 : vector<8x1x1xf32>
    %19 = math.exp %18 : vector<8x1x1xf32>
    %20 = arith.mulf %8, %19 : vector<8x1x1xf32>
    %cst_7 = arith.constant dense<0.000000e+00> : vector<8x1xf32>
    %21 = vector.multi_reduction <add>, %20, %cst_7 [1] : vector<8x1x1xf32> to vector<8x1xf32>
    %22 = arith.addf %16, %21 : vector<8x1xf32>
    %23 = vector.broadcast %14 : vector<8x1xf32> to vector<8x36xf32>
    %24 = arith.subf %10, %23 : vector<8x36xf32>
    %25 = math.exp %24 : vector<8x36xf32>
    %cst_8 = arith.constant dense<0.000000e+00> : vector<8xf32>
    %26 = vector.multi_reduction <add>, %25, %cst_8 [1] : vector<8x36xf32> to vector<8xf32>
    %27 = vector.shape_cast %26 : vector<8xf32> to vector<8x1xf32>
    %cst_9 = arith.constant 0.000000e+00 : f32
    %28 = vector.broadcast %cst_9 : f32 to vector<8x1xf32>
    %29 = arith.subf %28, %14 : vector<8x1xf32>
    %30 = math.exp %29 : vector<8x1xf32>
    %cst_10 = arith.constant 2.800000e+01 : f32
    %31 = vector.broadcast %cst_10 : f32 to vector<8x1xf32>
    %32 = arith.mulf %31, %30 : vector<8x1xf32>
    %33 = arith.addf %27, %32 : vector<8x1xf32>
    %34 = arith.subf %14, %15 : vector<8x1xf32>
    %35 = math.exp %34 : vector<8x1xf32>
    %36 = arith.mulf %33, %35 : vector<8x1xf32>
    %37 = arith.addf %22, %36 : vector<8x1xf32>
    %38 = vector.shape_cast %37 : vector<8x1xf32> to vector<8x1x1xf32>
    %39 = arith.mulf %8, %38 : vector<8x1x1xf32>
    %40 = arith.divf %19, %39 : vector<8x1x1xf32>
    %41 = arith.mulf %6, %6 : vector<8x1x64xf32>
    %42 = vector.broadcast %40 : vector<8x1x1xf32> to vector<8x1x64xf32>
    %43 = arith.mulf %41, %42 : vector<8x1x64xf32>
    %44 = vector.shape_cast %43 : vector<8x1x64xf32> to vector<8x64xf32>
    %c0_11 = arith.constant 0 : index
    %c0_12 = arith.constant 0 : index
    %45 = vector.load %arg2[%c0_11, %c0_12] : memref<8x100xf32, #tpu.memory_space<vmem>>, vector<8x64xf32>
    tpu.vector_store %arg2[%c0_11, %c0_12], %44 {strides = array<i32>} : memref<8x100xf32, #tpu.memory_space<vmem>>, vector<8x64xf32>,
    %46 = arith.mulf %33, %37 : vector<8x1xf32>
    %47 = arith.divf %35, %46 : vector<8x1xf32>
    %48 = arith.mulf %25, %25 : vector<8x36xf32>
    %49 = vector.broadcast %47 : vector<8x1xf32> to vector<8x36xf32>
    %50 = arith.mulf %48, %49 : vector<8x36xf32>
    %c0_13 = arith.constant 0 : index
    %c64_14 = arith.constant 64 : index
    %51 = vector.load %arg2[%c0_13, %c64_14] : memref<8x100xf32, #tpu.memory_space<vmem>>, vector<8x36xf32>
    tpu.vector_store %arg2[%c0_13, %c64_14], %50 {strides = array<i32>} : memref<8x100xf32, #tpu.memory_space<vmem>>, vector<8x36xf32>,
    return
  }
  func.func @transform_0(%arg0: i32) -> (i32, i32) {
    %c0_i32 = arith.constant 0 : i32
    %c0_i32_0 = arith.constant 0 : i32
    return %arg0, %c0_i32 : i32, i32
  }
  func.func @transform_1(%arg0: i32) -> (i32, i32) {
    %c0_i32 = arith.constant 0 : i32
    %c0_i32_0 = arith.constant 0 : i32
    return %arg0, %c0_i32 : i32, i32
  }
}

</mosaic_0001>

<llo_original>
// kernel: tpu_custom_call.1
$region0: #{tpu_custom_call.1}
  #allocation0 [shape = 'u32[]', space=smem, size = 0x4, offset = 0x4, fixed_abs, tag = 'smem constant byte address 0x4 - core index']
  #allocation1 [shape = 'u32[144,128]{1,0:T(1,128)}', space=vmem, size = 0x12000, scoped, tag = 'internal scratch']
  %s0 = inlined_call_operand.hbm [shape: f32[8,100], index: 0, kind: input, shape index: {}]
  %s1 = inlined_call_operand.hbm [shape: f32[8,100], index: 1, kind: output, shape index: {}]
  %s2 = sld [smem:[#allocation0]]
  $region18: #{tpu_custom_call.1} parent=0
    _
  %s4 = ssub.s32 1, %s2
  %s5 = scalar_select 0, %s4, %s2
  $region1: #{tpu_custom_call.1} parent=0
    #allocation2 [shape = 'u8[4096]{0}', space=vmem, size = 0x1000, scoped, tag = 'input window, operand 0, single buffered']
    #allocation3 [shape = 's32[1]{0}', space=sflag, size = 0x4, scoped, tag = 'scoped memory for tpu_custom_call.1']
    #allocation4 [shape = 's32[1]{0}', space=sflag, size = 0x4, scoped, tag = 'scoped memory for tpu_custom_call.1']
    #allocation5 [shape = 'u8[4096]{0}', space=vmem, size = 0x1000, scoped, tag = 'output window, operand 0, single buffered']
    %6 = vsyncpa [#allocation3], 0
    %7 = vsyncpa [#allocation4], 0
    // Predicated region
    $region2: #{tpu_custom_call.1} parent=1 // pred_check
      _
    $region3: #{tpu_custom_call.1} parent=1 // pred_check_branch
      %9 = sbr.rel (0) target = $region5
    $region4: #{tpu_custom_call.1} parent=1 // pred_region
      %s11 = ssub.s32 128, 128
      %12 = vsyncadd [#allocation3], %s11
      %s14 = sshll.u32 [#allocation2], 4
      %s15 = int_to_ptr.vmem [resolvable:$true] %s14
      %17 = dma.hbm_to_vmem [thread:$0]  %s0, 128, %s15, [#allocation3]
    $region5: #{tpu_custom_call.1} parent=1 // pred_fallthru
      _
    // Predicated region
    $region6: #{tpu_custom_call.1} parent=1 // pred_check
      _
    $region7: #{tpu_custom_call.1} parent=1 // pred_check_branch
      %19 = sbr.rel (0) target = $region9
    $region8: #{tpu_custom_call.1} parent=1 // pred_region
      %20 = dma.done [#allocation3], 128
    $region9: #{tpu_custom_call.1} parent=1 // pred_fallthru
      _
    %v21 = vld [vmem:[#allocation2] sm:$0xff]
    %v23 = vcombine.high %v21, %v21
    %v25 = vunpack.c.l.s4 1966171168
    %v26 = vunpack.c.0.s8 %v25
    %v27 = vlaneseq
    %v28 = vshrl.u32 %v27, 7
    %v29 = vsub.s32 %v26, %v28
    %v30 = vrot.slane %v21, %v29
    %v32 = vunpack.c.l.s4 1966171168
    %v33 = vunpack.c.0.s8 %v32
    %v34 = vlaneseq
    %v35 = vshrl.u32 %v34, 7
    %v36 = vsub.s32 %v33, %v35
    %v37 = vrot.slane %v23, %v36
    %v38 = vcombine.high %v30, %v30
    %v39 = vcombine.high %v37, %v37
    %v41 = vunpack.c.l.s4 1966171168
    %v42 = vunpack.c.0.s8 %v41
    %v43 = vlaneseq
    %v44 = vshrl.u32 %v43, 7
    %v45 = vsub.s32 %v42, %v44
    %v46 = vrot.slane %v30, %v45
    %v48 = vunpack.c.l.s4 1966171168
    %v49 = vunpack.c.0.s8 %v48
    %v50 = vlaneseq
    %v51 = vshrl.u32 %v50, 7
    %v52 = vsub.s32 %v49, %v51
    %v53 = vrot.slane %v37, %v52
    %v55 = vunpack.c.l.s4 1966171168
    %v56 = vunpack.c.0.s8 %v55
    %v57 = vlaneseq
    %v58 = vshrl.u32 %v57, 7
    %v59 = vsub.s32 %v56, %v58
    %v60 = vrot.slane %v38, %v59
    %v62 = vunpack.c.l.s4 1966171168
    %v63 = vunpack.c.0.s8 %v62
    %v64 = vlaneseq
    %v65 = vshrl.u32 %v64, 7
    %v66 = vsub.s32 %v63, %v65
    %v67 = vrot.slane %v39, %v66
    %v68 = vcombine.high %v46, %v46
    %v69 = vcombine.high %v53, %v53
    %v70 = vcombine.high %v60, %v60
    %v71 = vcombine.high %v67, %v67
    %vm80 = vcmask 516096
    %v81 = vsel %vm80, %v46, -inf
    %82 = vmax.xlane.f32.xlu0 %v81
    %v83 = vpop.xlane.xlu0 %82
    %v84 = vsel %vm80, %v60, -inf
    %85 = vmax.xlane.f32.xlu0 %v84
    %v86 = vpop.xlane.xlu0 %85
    %v87 = vsel %vm80, %v68, -inf
    %88 = vmax.xlane.f32.xlu0 %v87
    %v89 = vpop.xlane.xlu0 %88
    %v90 = vsel %vm80, %v70, -inf
    %91 = vmax.xlane.f32.xlu0 %v90
    %v92 = vpop.xlane.xlu0 %91
    %v93 = vsel %vm80, %v53, -inf
    %94 = vmax.xlane.f32.xlu0 %v93
    %v95 = vpop.xlane.xlu0 %94
    %v96 = vsel %vm80, %v67, -inf
    %97 = vmax.xlane.f32.xlu0 %v96
    %v98 = vpop.xlane.xlu0 %97
    %v99 = vsel %vm80, %v69, -inf
    %100 = vmax.xlane.f32.xlu0 %v99
    %v101 = vpop.xlane.xlu0 %100
    %v102 = vsel %vm80, %v71, -inf
    %103 = vmax.xlane.f32.xlu0 %v102
    %v104 = vpop.xlane.xlu0 %103
    %v105 = vsub.f32 %v46, %v83
    %v106 = vsub.f32 %v60, %v86
    %v107 = vsub.f32 %v68, %v89
    %v108 = vsub.f32 %v70, %v92
    %v109 = vsub.f32 %v53, %v95
    %v110 = vsub.f32 %v67, %v98
    %v111 = vsub.f32 %v69, %v101
    %v112 = vsub.f32 %v71, %v104
    %v113 = vmul.f32 %v105, 1.442695
    %v114 = vpow.pop %v113
    %v115 = vmul.f32 %v106, 1.442695
    %v116 = vpow.pop %v115
    %v117 = vmul.f32 %v107, 1.442695
    %v118 = vpow.pop %v117
    %v119 = vmul.f32 %v108, 1.442695
    %v120 = vpow.pop %v119
    %v121 = vmul.f32 %v109, 1.442695
    %v122 = vpow.pop %v121
    %v123 = vmul.f32 %v110, 1.442695
    %v124 = vpow.pop %v123
    %v125 = vmul.f32 %v111, 1.442695
    %v126 = vpow.pop %v125
    %v127 = vmul.f32 %v112, 1.442695
    %v128 = vpow.pop %v127
    %v129 = vsel %vm80, %v114, 0.0
    %130 = vadd.xlane.f32.xlu0 %v129
    %v131 = vpop.xlane.xlu0 %130
    %v132 = vsel %vm80, %v116, 0.0
    %133 = vadd.xlane.f32.xlu0 %v132
    %v134 = vpop.xlane.xlu0 %133
    %v135 = vsel %vm80, %v118, 0.0
    %136 = vadd.xlane.f32.xlu0 %v135
    %v137 = vpop.xlane.xlu0 %136
    %v138 = vsel %vm80, %v120, 0.0
    %139 = vadd.xlane.f32.xlu0 %v138
    %v140 = vpop.xlane.xlu0 %139
    %v141 = vsel %vm80, %v122, 0.0
    %142 = vadd.xlane.f32.xlu0 %v141
    %v143 = vpop.xlane.xlu0 %142
    %v144 = vsel %vm80, %v124, 0.0
    %145 = vadd.xlane.f32.xlu0 %v144
    %v146 = vpop.xlane.xlu0 %145
    %v147 = vsel %vm80, %v126, 0.0
    %148 = vadd.xlane.f32.xlu0 %v147
    %v149 = vpop.xlane.xlu0 %148
    %v150 = vsel %vm80, %v128, 0.0
    %151 = vadd.xlane.f32.xlu0 %v150
    %v152 = vpop.xlane.xlu0 %151
    %vm153 = vcmask 818688
    %v154 = vsel %vm153, %v21, -inf
    %155 = vmax.xlane.f32.xlu0 %v154
    %v156 = vpop.xlane.xlu0 %155
    %v157 = vmax.f32 %v156, 0.0
    %v159 = vlaneseq
    %v160 = vshrl.u32 %v159, 7
    %v161 = vsub.s32 0, %v160
    %v162 = vrot.slane %v157, %v161
    %v163 = vlaneseq
    %v164 = vshrl.u32 %v163, 7
    %v165 = vsub.s32 1, %v164
    %v166 = vrot.slane %v157, %v165
    %v167 = vlaneseq
    %v168 = vshrl.u32 %v167, 7
    %v169 = vsub.s32 2, %v168
    %v170 = vrot.slane %v157, %v169
    %v171 = vlaneseq
    %v172 = vshrl.u32 %v171, 7
    %v173 = vsub.s32 3, %v172
    %v174 = vrot.slane %v157, %v173
    %v175 = vlaneseq
    %v176 = vshrl.u32 %v175, 7
    %v177 = vsub.s32 4, %v176
    %v178 = vrot.slane %v157, %v177
    %v179 = vlaneseq
    %v180 = vshrl.u32 %v179, 7
    %v181 = vsub.s32 5, %v180
    %v182 = vrot.slane %v157, %v181
    %v183 = vlaneseq
    %v184 = vshrl.u32 %v183, 7
    %v185 = vsub.s32 6, %v184
    %v186 = vrot.slane %v157, %v185
    %v187 = vlaneseq
    %v188 = vshrl.u32 %v187, 7
    %v189 = vsub.s32 7, %v188
    %v190 = vrot.slane %v157, %v189
    %v199 = vmax.f32 %v83, %v162
    %v200 = vmax.f32 %v86, %v166
    %v201 = vmax.f32 %v89, %v170
    %v202 = vmax.f32 %v92, %v174
    %v203 = vmax.f32 %v95, %v178
    %v204 = vmax.f32 %v98, %v182
    %v205 = vmax.f32 %v101, %v186
    %v206 = vmax.f32 %v104, %v190
    %v207 = vsub.f32 %v83, %v199
    %v208 = vsub.f32 %v86, %v200
    %v209 = vsub.f32 %v89, %v201
    %v210 = vsub.f32 %v92, %v202
    %v211 = vsub.f32 %v95, %v203
    %v212 = vsub.f32 %v98, %v204
    %v213 = vsub.f32 %v101, %v205
    %v214 = vsub.f32 %v104, %v206
    %v215 = vmul.f32 %v207, 1.442695
    %v216 = vpow.pop %v215
    %v217 = vmul.f32 %v208, 1.442695
    %v218 = vpow.pop %v217
    %v219 = vmul.f32 %v209, 1.442695
    %v220 = vpow.pop %v219
    %v221 = vmul.f32 %v210, 1.442695
    %v222 = vpow.pop %v221
    %v223 = vmul.f32 %v211, 1.442695
    %v224 = vpow.pop %v223
    %v225 = vmul.f32 %v212, 1.442695
    %v226 = vpow.pop %v225
    %v227 = vmul.f32 %v213, 1.442695
    %v228 = vpow.pop %v227
    %v229 = vmul.f32 %v214, 1.442695
    %v230 = vpow.pop %v229
    %v231 = vmul.f32 %v131, %v216
    %v232 = vmul.f32 %v134, %v218
    %v233 = vmul.f32 %v137, %v220
    %v234 = vmul.f32 %v140, %v222
    %v235 = vmul.f32 %v143, %v224
    %v236 = vmul.f32 %v146, %v226
    %v237 = vmul.f32 %v149, %v228
    %v238 = vmul.f32 %v152, %v230
    %v239 = vadd.f32 %v231, 0.0
    %v240 = vadd.f32 %v232, 0.0
    %v241 = vadd.f32 %v233, 0.0
    %v242 = vadd.f32 %v234, 0.0
    %v243 = vadd.f32 %v235, 0.0
    %v244 = vadd.f32 %v236, 0.0
    %v245 = vadd.f32 %v237, 0.0
    %v246 = vadd.f32 %v238, 0.0
    %v247 = vadd.f32 %v239, 0.0
    %v248 = vadd.f32 %v240, 0.0
    %v249 = vadd.f32 %v241, 0.0
    %v250 = vadd.f32 %v242, 0.0
    %v251 = vadd.f32 %v243, 0.0
    %v252 = vadd.f32 %v244, 0.0
    %v253 = vadd.f32 %v245, 0.0
    %v254 = vadd.f32 %v246, 0.0
    %v255 = vsub.f32 %v21, %v157
    %v256 = vmul.f32 %v255, 1.442695
    %v257 = vpow.pop %v256
    %259 = vrot.lane.b32.xlu0 %v257, 64
    %v260 = vpop.permute.xlu0 %259
    %vm262 = vcmask 293888
    %v263 = vsel %vm262, %v260, 0.0
    %264 = vadd.xlane.f32.xlu0 %v263
    %v265 = vpop.xlane.xlu0 %264
    %v266 = vsub.f32 0.0, %v157
    %v267 = vmul.f32 %v266, 1.442695
    %v268 = vpow.pop %v267
    %v269 = vmul.f32 %v268, 28.0
    %v270 = vadd.f32 %v265, %v269
    %v279 = vrot.slane %v200, 7
    %vm280 = vcmask 1041409
    %v281 = vsel %vm280, %v279, %v199
    %v282 = vrot.slane %v201, 6
    %vm283 = vcmask 1042434
    %v284 = vsel %vm283, %v282, %v281
    %v285 = vrot.slane %v202, 5
    %vm286 = vcmask 1043459
    %v287 = vsel %vm286, %v285, %v284
    %v288 = vrot.slane %v203, 4
    %vm289 = vcmask 1044484
    %v290 = vsel %vm289, %v288, %v287
    %v291 = vrot.slane %v204, 3
    %vm292 = vcmask 1045509
    %v293 = vsel %vm292, %v291, %v290
    %v294 = vrot.slane %v205, 2
    %vm295 = vcmask 1046534
    %v296 = vsel %vm295, %v294, %v293
    %v297 = vrot.slane %v206, 1
    %vm298 = vcmask 1047559
    %v299 = vsel %vm298, %v297, %v296
    %v301 = vsub.f32 %v157, %v299
    %v302 = vmul.f32 %v301, 1.442695
    %v303 = vpow.pop %v302
    %v304 = vmul.f32 %v270, %v303
    %v306 = vrot.slane %v304, 1
    %v307 = vrot.slane %v304, 2
    %v308 = vrot.slane %v304, 3
    %v309 = vrot.slane %v304, 4
    %v310 = vrot.slane %v304, 5
    %v311 = vrot.slane %v304, 6
    %v312 = vrot.slane %v304, 7
    %v321 = vadd.f32 %v247, %v304
    %v322 = vadd.f32 %v248, %v306
    %v323 = vadd.f32 %v249, %v307
    %v324 = vadd.f32 %v250, %v308
    %v325 = vadd.f32 %v251, %v309
    %v326 = vadd.f32 %v252, %v310
    %v327 = vadd.f32 %v253, %v311
    %v328 = vadd.f32 %v254, %v312
    %v329 = vmul.f32 %v131, %v321
    %v330 = vmul.f32 %v134, %v322
    %v331 = vmul.f32 %v137, %v323
    %v332 = vmul.f32 %v140, %v324
    %v333 = vmul.f32 %v143, %v325
    %v334 = vmul.f32 %v146, %v326
    %v335 = vmul.f32 %v149, %v327
    %v336 = vmul.f32 %v152, %v328
    %v337 = vrcp.pop %v329
    %v338 = vmul.f32 %v216, %v337
    %v339 = vrcp.pop %v330
    %v340 = vmul.f32 %v218, %v339
    %v341 = vrcp.pop %v331
    %v342 = vmul.f32 %v220, %v341
    %v343 = vrcp.pop %v332
    %v344 = vmul.f32 %v222, %v343
    %v345 = vrcp.pop %v333
    %v346 = vmul.f32 %v224, %v345
    %v347 = vrcp.pop %v334
    %v348 = vmul.f32 %v226, %v347
    %v349 = vrcp.pop %v335
    %v350 = vmul.f32 %v228, %v349
    %v351 = vrcp.pop %v336
    %v352 = vmul.f32 %v230, %v351
    %v353 = vmul.f32 %v114, %v114
    %v354 = vmul.f32 %v116, %v116
    %v355 = vmul.f32 %v118, %v118
    %v356 = vmul.f32 %v120, %v120
    %v357 = vmul.f32 %v122, %v122
    %v358 = vmul.f32 %v124, %v124
    %v359 = vmul.f32 %v126, %v126
    %v360 = vmul.f32 %v128, %v128
    %362 = vset.pattern.permute.xlu0 0
    %363 = vperm.xlu0 %362, %v338
    %v364 = vpop.permute.xlu0 %363
    %367 = vset.pattern.permute.xlu0 0
    %368 = vperm.xlu0 %367, %v340
    %v369 = vpop.permute.xlu0 %368
    %372 = vset.pattern.permute.xlu0 0
    %373 = vperm.xlu0 %372, %v342
    %v374 = vpop.permute.xlu0 %373
    %377 = vset.pattern.permute.xlu0 0
    %378 = vperm.xlu0 %377, %v344
    %v379 = vpop.permute.xlu0 %378
    %382 = vset.pattern.permute.xlu0 0
    %383 = vperm.xlu0 %382, %v346
    %v384 = vpop.permute.xlu0 %383
    %387 = vset.pattern.permute.xlu0 0
    %388 = vperm.xlu0 %387, %v348
    %v389 = vpop.permute.xlu0 %388
    %392 = vset.pattern.permute.xlu0 0
    %393 = vperm.xlu0 %392, %v350
    %v394 = vpop.permute.xlu0 %393
    %397 = vset.pattern.permute.xlu0 0
    %398 = vperm.xlu0 %397, %v352
    %v399 = vpop.permute.xlu0 %398
    %v401 = vmul.f32 %v353, %v364
    %v402 = vmul.f32 %v354, %v369
    %v403 = vmul.f32 %v355, %v374
    %v404 = vmul.f32 %v356, %v379
    %v405 = vmul.f32 %v357, %v384
    %v406 = vmul.f32 %v358, %v389
    %v407 = vmul.f32 %v359, %v394
    %v408 = vmul.f32 %v360, %v399
    %v417 = vcombine.low %v401, %v402
    %v418 = vcombine.low %v403, %v404
    %v419 = vcombine.low %v405, %v406
    %v420 = vcombine.low %v407, %v408
    %v422 = vunpack.c.l.s4 1966171168
    %v423 = vunpack.c.0.s8 %v422
    %v424 = vlaneseq
    %v425 = vshrl.u32 %v424, 7
    %v426 = vsub.s32 %v423, %v425
    %v427 = vrot.slane %v417, %v426
    %v429 = vunpack.c.l.s4 1966171168
    %v430 = vunpack.c.0.s8 %v429
    %v431 = vlaneseq
    %v432 = vshrl.u32 %v431, 7
    %v433 = vsub.s32 %v430, %v432
    %v434 = vrot.slane %v418, %v433
    %v436 = vunpack.c.l.s4 1966171168
    %v437 = vunpack.c.0.s8 %v436
    %v438 = vlaneseq
    %v439 = vshrl.u32 %v438, 7
    %v440 = vsub.s32 %v437, %v439
    %v441 = vrot.slane %v419, %v440
    %v443 = vunpack.c.l.s4 1966171168
    %v444 = vunpack.c.0.s8 %v443
    %v445 = vlaneseq
    %v446 = vshrl.u32 %v445, 7
    %v447 = vsub.s32 %v444, %v446
    %v448 = vrot.slane %v420, %v447
    %v449 = vcombine.low %v427, %v434
    %v450 = vcombine.low %v441, %v448
    %v452 = vunpack.c.l.s4 1966171168
    %v453 = vunpack.c.0.s8 %v452
    %v454 = vlaneseq
    %v455 = vshrl.u32 %v454, 7
    %v456 = vsub.s32 %v453, %v455
    %v457 = vrot.slane %v449, %v456
    %v459 = vunpack.c.l.s4 1966171168
    %v460 = vunpack.c.0.s8 %v459
    %v461 = vlaneseq
    %v462 = vshrl.u32 %v461, 7
    %v463 = vsub.s32 %v460, %v462
    %v464 = vrot.slane %v450, %v463
    %v465 = vcombine.low %v457, %v464
    %vm467 = vcmask 523264
    %468 = vst.msk [vmem:[#allocation5] sm:$0xff] %vm467, %v465
    %v477 = vrot.slane %v322, 7
    %v478 = vsel %vm280, %v477, %v321
    %v479 = vrot.slane %v323, 6
    %v480 = vsel %vm283, %v479, %v478
    %v481 = vrot.slane %v324, 5
    %v482 = vsel %vm286, %v481, %v480
    %v483 = vrot.slane %v325, 4
    %v484 = vsel %vm289, %v483, %v482
    %v485 = vrot.slane %v326, 3
    %v486 = vsel %vm292, %v485, %v484
    %v487 = vrot.slane %v327, 2
    %v488 = vsel %vm295, %v487, %v486
    %v489 = vrot.slane %v328, 1
    %v490 = vsel %vm298, %v489, %v488
    %v492 = vmul.f32 %v270, %v490
    %v493 = vrcp.pop %v492
    %v494 = vmul.f32 %v303, %v493
    %v495 = vmul.f32 %v257, %v257
    %497 = vset.pattern.permute.xlu0 0
    %498 = vperm.xlu0 %497, %v494
    %v499 = vpop.permute.xlu0 %498
    %v501 = vmul.f32 %v495, %v499
    %502 = vst.msk [vmem:[#allocation5] sm:$0xff] %vm153, %v501
    // Predicated region
    $region10: #{tpu_custom_call.1} parent=1 // pred_check
      _
    $region11: #{tpu_custom_call.1} parent=1 // pred_check_branch
      %504 = sbr.rel (0) target = $region13
    $region12: #{tpu_custom_call.1} parent=1 // pred_region
      %s506 = ssub.s32 128, 128
      %507 = vsyncadd [#allocation4], %s506
      %s509 = sshll.u32 [#allocation5], 4
      %s510 = int_to_ptr.vmem [resolvable:$true] %s509
      %512 = dma.vmem_to_hbm [thread:$0]  %s510, 128, %s1, [#allocation4]
    $region13: #{tpu_custom_call.1} parent=1 // pred_fallthru
      _
    // Predicated region
    $region14: #{tpu_custom_call.1} parent=1 // pred_check
      _
    $region15: #{tpu_custom_call.1} parent=1 // pred_check_branch
      %514 = sbr.rel (0) target = $region17
    $region16: #{tpu_custom_call.1} parent=1 // pred_region
      %515 = dma.done [#allocation4], 128
    $region17: #{tpu_custom_call.1} parent=1 // pred_fallthru
      _
    %516 = vsyncpa [#allocation3], 1
    %517 = vsyncpa [#allocation4], 1

</llo_original>
